<compile_context>
chip_gen: v7x
topology: tpu7x:2x2x1
jax: 0.10.0
libtpu: 0.0.40
codegen_flags: <defaults>
</compile_context>

<pallas_src>
import functools

import jax
import jax.numpy as jnp
from jax.experimental import pallas as pl
from jax.experimental.pallas import tpu as pltpu


# ----------------------------------------------------------------------------
# Kernel 1: CNN stand-in, gridded over the batch:
#   conv3x3 (im2col matmul, bf16 MXU) -> ReLU -> in-kernel mean pool -> fc
# ----------------------------------------------------------------------------
def _cnn_kernel(xcol_ref, wcol_ref, cb_ref, fcw_ref, fcb_ref, out_ref, *, inv_hw):
    conv = (jnp.dot(xcol_ref[0], wcol_ref[...],
                    preferred_element_type=jnp.float32)
            + cb_ref[...])                                   # (HW, Cout) f32
    conv = jnp.maximum(conv, 0.0)
    # Global-average-pool as an in-kernel sublane reduction (XLU slot), not a
    # dense (B, B*HW) pooling matmul: no extra HBM traffic / wasted MXU FLOPs.
    pooled = jnp.sum(conv, axis=0, keepdims=True) * inv_hw   # (1, Cout)
    out_ref[0] = (jnp.dot(pooled.astype(jnp.bfloat16), fcw_ref[...],
                          preferred_element_type=jnp.float32)
                  + fcb_ref[...])                            # (1, E)


def cnn_forward(x_nhwc, conv_w, conv_b, fc_w, fc_b):
    B, Himg, Wimg, Cin = x_nhwc.shape
    Cout = conv_w.shape[-1]
    E = fc_w.shape[-1]
    HW = Himg * Wimg

    # TODO(synk): for backbone-scale images, move the 3x3 gather in-kernel
    # (shifted reads of a padded NHWC VMEM tile) and tile the HW rows; the
    # wrapper-side im2col below costs ~9x HBM read traffic (harmless at 16x16).
    xp = jnp.pad(x_nhwc, ((0, 0), (1, 1), (1, 1), (0, 0)))
    patches = [xp[:, dh:dh + Himg, dw:dw + Wimg, :]
               for dh in range(3) for dw in range(3)]
    x_col = jnp.concatenate(patches, axis=-1).reshape(B, HW, 9 * Cin)
    x_col = x_col.astype(jnp.bfloat16)
    w_col = conv_w.reshape(9 * Cin, Cout).astype(jnp.bfloat16)
    fc_w_bf = fc_w.astype(jnp.bfloat16)

    kernel = functools.partial(_cnn_kernel, inv_hw=1.0 / float(HW))
    flops = 2 * B * HW * 9 * Cin * Cout + 2 * B * Cout * E
    bytes_acc = 2 * B * HW * 9 * Cin + 2 * 9 * Cin * Cout + 4 * Cout \
        + 2 * Cout * E + 4 * E + 4 * B * E

    out = pl.pallas_call(
        kernel,
        out_shape=jax.ShapeDtypeStruct((B, 1, E), jnp.float32),
        grid_spec=pltpu.PrefetchScalarGridSpec(
            num_scalar_prefetch=0,
            grid=(B,),
            in_specs=[
                pl.BlockSpec((1, HW, 9 * Cin), lambda b: (b, 0, 0)),
                pl.BlockSpec((9 * Cin, Cout), lambda b: (0, 0)),
                pl.BlockSpec((1, Cout), lambda b: (0, 0)),
                pl.BlockSpec((Cout, E), lambda b: (0, 0)),
                pl.BlockSpec((1, E), lambda b: (0, 0)),
            ],
            out_specs=pl.BlockSpec((1, 1, E), lambda b: (b, 0, 0)),
        ),
        compiler_params=pltpu.CompilerParams(
            # Batch items are independent -> shard across TensorCores on v7x.
            dimension_semantics=("parallel",),
            vmem_limit_bytes=32 * 1024 * 1024,
        ),
        cost_estimate=pl.CostEstimate(
            flops=flops, transcendentals=0, bytes_accessed=bytes_acc),
    )(x_col, w_col, conv_b, fc_w_bf, fc_b)
    return out[:, 0, :]                                       # (B, E)


# ----------------------------------------------------------------------------
# Kernel 2: 2-layer LSTM + classifier + max-over-vocab.
# Grid = (time chunks, vocab tiles).  The recurrence runs only on vocab tile 0;
# h/c live in constant-index (VMEM-resident) output blocks; the chunk's h1 is
# stored once (aligned) into a bf16 scratch and classified tile-by-tile with a
# running max into a lane-dense (1, Tc*B) pred block.
# ----------------------------------------------------------------------------
def _lstm_cls_kernel(x_ref, wih0_ref, whh0_ref, b0_ref, wih1_ref, whh1_ref,
                     b1_ref, wc_ref, bc_ref,
                     pred_ref, hn_ref, cn_ref,
                     h1buf, *, Tc, B, H):
    tb = pl.program_id(0)
    vb = pl.program_id(1)

    @pl.when(jnp.logical_and(tb == 0, vb == 0))
    def _init():
        hn_ref[...] = jnp.zeros_like(hn_ref)
        cn_ref[...] = jnp.zeros_like(cn_ref)

    @pl.when(vb == 0)
    def _recurrence():
        whh0 = whh0_ref[...]                          # (H, 4H) bf16
        whh1 = whh1_ref[...]

        def cell(pre, h, c, whh):
            gates = pre + jnp.dot(h.astype(jnp.bfloat16), whh,
                                  preferred_element_type=jnp.float32)
            gi = jax.nn.sigmoid(gates[:, 0 * H:1 * H])    # PyTorch order i,f,g,o
            gf = jax.nn.sigmoid(gates[:, 1 * H:2 * H])
            gg = jnp.tanh(gates[:, 2 * H:3 * H])
            go = jax.nn.sigmoid(gates[:, 3 * H:4 * H])
            c_new = gf * c + gi * gg
            h_new = go * jnp.tanh(c_new)
            return h_new, c_new

        # Carried state lives in the constant-index (VMEM-resident) out blocks.
        h0 = hn_ref[0]
        c0 = cn_ref[0]
        h1 = hn_ref[1]
        c1 = cn_ref[1]

        # Layer 0: hoisted input projection (one chunk-wide MXU matmul), then a
        # fully unrolled serial recurrence (state stays in vregs).
        xproj0 = (jnp.dot(x_ref[...], wih0_ref[...],
                          preferred_element_type=jnp.float32)
                  + b0_ref[...])                       # (Tc*B, 4H) f32
        h0_steps = []
        for i in range(Tc):
            h0, c0 = cell(xproj0[i * B:(i + 1) * B, :], h0, c0, whh0)
            h0_steps.append(h0)
        h0cat = jnp.concatenate(h0_steps, axis=0)      # (Tc*B, H)

        # Layer 1: its input projection is also one chunk-wide matmul.
        xproj1 = (jnp.dot(h0cat.astype(jnp.bfloat16), wih1_ref[...],
                          preferred_element_type=jnp.float32)
                  + b1_ref[...])                       # (Tc*B, 4H) f32
        h1_steps = []
        for i in range(Tc):
            h1, c1 = cell(xproj1[i * B:(i + 1) * B, :], h1, c1, whh1)
            h1_steps.append(h1)
        h1cat = jnp.concatenate(h1_steps, axis=0)      # (Tc*B, H)

        hn_ref[0] = h0
        cn_ref[0] = c0
        hn_ref[1] = h1
        cn_ref[1] = c1
        # Single aligned full-block store (no per-step misaligned sublane stores).
        h1buf[...] = h1cat.astype(jnp.bfloat16)

    # Classifier for this vocab tile: (Tc*B, H) @ (H, Vt) + running max over
    # tiles.  pred block is lane-dense (1, Tc*B) and resident across the V axis.
    logits = (jnp.dot(h1buf[...], wc_ref[...],
                      preferred_element_type=jnp.float32)
              + bc_ref[...])                           # (Tc*B, Vt) f32
    row = jnp.max(logits, axis=-1)[None, :]            # (1, Tc*B)

    @pl.when(vb == 0)
    def _first_tile():
        pred_ref[...] = row

    @pl.when(vb > 0)
    def _later_tiles():
        pred_ref[...] = jnp.maximum(pred_ref[...], row)


def _pick_vocab_tile(V, max_cols=2048):
    """Vocab tile width: full V when small, else a 128-multiple divisor."""
    if V <= max_cols:
        return V
    for vt in range(max_cols - max_cols % 128, 127, -128):
        if V % vt == 0:
            return vt
    # TODO(synk): mask the padded tail when V has no 128-multiple divisor.
    return V


def _pick_time_chunk(T, B, E, H, Vt, chunk_budget_bytes=8 << 20):
    """Time-chunk Tc (divisor of T): per-chunk VMEM footprint under budget,
    Tc*B a multiple of 8, preferring Tc*B >= 128 MXU rows.  Budgeting keeps the
    whole call comfortably under v7x's 64 MiB VMEM."""
    def chunk_bytes(tc):
        rows = tc * B
        return rows * (2 * 2 * E          # bf16 x block, double-buffered
                       + 2 * 4 * 4 * H    # hoisted gate pre-activations (f32)
                       + 4 * H            # h chunk values
                       + 4 * Vt)          # logits tile (f32)

    divisors = [d for d in range(1, T + 1) if T % d == 0]
    aligned = [d for d in divisors
               if (d * B) % 8 == 0 and chunk_bytes(d) <= chunk_budget_bytes]
    if aligned:
        big = [d for d in aligned if d * B >= 128]
        return min(big) if big else max(aligned)
    # TODO(synk): pad rows to a multiple of 8 instead of reverting to Tc=T when
    # no aligned divisor fits (only pathological T/B combinations hit this).
    return T


def lstm_classifier_forward(x_tbe, wih0, whh0, b0, wih1, whh1, b1, wcT, bc):
    T, B, E = x_tbe.shape
    H = whh0.shape[0]
    V = wcT.shape[1]

    Vt = _pick_vocab_tile(V)
    Tc = _pick_time_chunk(T, B, E, H, Vt)
    nT = T // Tc
    nV = V // Vt

    # bf16 matmul operands (native MXU input on v5e/v6e/v7x); biases, cell
    # state, gate activations and the vocab max stay in f32.
    x2d = x_tbe.reshape(T * B, E).astype(jnp.bfloat16)
    wih0b = wih0.astype(jnp.bfloat16)
    whh0b = whh0.astype(jnp.bfloat16)
    wih1b = wih1.astype(jnp.bfloat16)
    whh1b = whh1.astype(jnp.bfloat16)
    wcb = wcT.astype(jnp.bfloat16)

    kernel = functools.partial(_lstm_cls_kernel, Tc=Tc, B=B, H=H)

    flops = 2 * T * B * (4 * H * (E + 3 * H) + H * V)
    transc = 10 * T * B * H
    bytes_acc = (2 * T * B * E + 2 * (E + 3 * H) * 4 * H + 4 * 8 * H
                 + nT * 2 * H * V + 4 * V + 4 * T * B + 4 * 4 * B * H)

    # TODO(synk): for large B, add a leading batch-tile grid axis marked
    # "parallel" so the two v7x TensorCores split the batch.
    pred_chunks, h_n, c_n = pl.pallas_call(
        kernel,
        out_shape=(
            jax.ShapeDtypeStruct((nT, Tc * B), jnp.float32),
            jax.ShapeDtypeStruct((2, B, H), jnp.float32),
            jax.ShapeDtypeStruct((2, B, H), jnp.float32),
        ),
        grid_spec=pltpu.PrefetchScalarGridSpec(
            num_scalar_prefetch=0,
            grid=(nT, nV),
            in_specs=[
                pl.BlockSpec((Tc * B, E), lambda tb, vb: (tb, 0)),
                pl.BlockSpec((E, 4 * H), lambda tb, vb: (0, 0)),
                pl.BlockSpec((H, 4 * H), lambda tb, vb: (0, 0)),
                pl.BlockSpec((1, 4 * H), lambda tb, vb: (0, 0)),
                pl.BlockSpec((H, 4 * H), lambda tb, vb: (0, 0)),
                pl.BlockSpec((H, 4 * H), lambda tb, vb: (0, 0)),
                pl.BlockSpec((1, 4 * H), lambda tb, vb: (0, 0)),
                pl.BlockSpec((H, Vt), lambda tb, vb: (0, vb)),
                pl.BlockSpec((1, Vt), lambda tb, vb: (0, vb)),
            ],
            out_specs=(
                pl.BlockSpec((1, Tc * B), lambda tb, vb: (tb, 0)),
                pl.BlockSpec((2, B, H), lambda tb, vb: (0, 0, 0)),
                pl.BlockSpec((2, B, H), lambda tb, vb: (0, 0, 0)),
            ),
            scratch_shapes=[pltpu.VMEM((Tc * B, H), jnp.bfloat16)],
        ),
        compiler_params=pltpu.CompilerParams(
            # Both axes carry state (recurrence over time, running max over V):
            # they must stay "arbitrary".
            dimension_semantics=("arbitrary", "arbitrary"),
            vmem_limit_bytes=32 * 1024 * 1024,
        ),
        cost_estimate=pl.CostEstimate(
            flops=int(flops), transcendentals=int(transc),
            bytes_accessed=int(bytes_acc)),
    )(x2d, wih0b, whh0b, b0, wih1b, whh1b, b1, wcb, bc)

    pred = pred_chunks.reshape(T, B).T                        # (B, T)
    return pred, (h_n, c_n)


# ----------------------------------------------------------------------------
# Full forward (glue: embedding gather, concat, transposes)
# ----------------------------------------------------------------------------
def caption_model_forward(imgs_nhwc, captions, p):
    # cnn(imgs).unsqueeze(1)
    img_feats = cnn_forward(imgs_nhwc, p["conv_w"], p["conv_b"],
                            p["fc_w"], p["fc_b"])              # (B, E)
    # captions.transpose(1,0)[:, :-1] -> embedder
    caps = captions.T[:, :-1]                                  # (B, S-1)
    emb = jnp.take(p["emb_w"], caps, axis=0)                   # (B, S-1, E)
    x = jnp.concatenate([img_feats[:, None, :], emb], axis=1)  # (B, T, E)
    x_tbe = jnp.transpose(x, (1, 0, 2))                        # (T, B, E)
    pred, state = lstm_classifier_forward(
        x_tbe, p["wih0"], p["whh0"], p["b0"],
        p["wih1"], p["whh1"], p["b1"], p["wcT"], p["bc"])
    return pred, state


# ----------------------------------------------------------------------------
# Pure-JAX f32 reference (for correctness check)
# ----------------------------------------------------------------------------
def reference_forward(imgs_nhwc, captions, p):
    conv = jax.lax.conv_general_dilated(
        imgs_nhwc, p["conv_w"], window_strides=(1, 1), padding="SAME",
        dimension_numbers=("NHWC", "HWIO", "NHWC"))
    conv = jnp.maximum(conv + p["conv_b"].reshape(1, 1, 1, -1), 0.0)
    pooled = conv.mean(axis=(1, 2))
    img_feats = pooled @ p["fc_w"] + p["fc_b"][0]

    caps = captions.T[:, :-1]
    emb = p["emb_w"][caps]
    x = jnp.concatenate([img_feats[:, None, :], emb], axis=1)
    x = jnp.transpose(x, (1, 0, 2))                            # (T, B, E)

    T_, B_, _ = x.shape
    H_ = p["whh0"].shape[0]
    h = [jnp.zeros((B_, H_)), jnp.zeros((B_, H_))]
    c = [jnp.zeros((B_, H_)), jnp.zeros((B_, H_))]
    wih = [p["wih0"], p["wih1"]]
    whh = [p["whh0"], p["whh1"]]
    bb = [p["b0"][0], p["b1"][0]]
    preds = []
    for t in range(T_):
        inp = x[t]
        for l in range(2):
            gates = inp @ wih[l] + h[l] @ whh[l] + bb[l]
            i = jax.nn.sigmoid(gates[:, 0:H_])
            f = jax.nn.sigmoid(gates[:, H_:2 * H_])
            g = jnp.tanh(gates[:, 2 * H_:3 * H_])
            o = jax.nn.sigmoid(gates[:, 3 * H_:4 * H_])
            c[l] = f * c[l] + i * g
            h[l] = o * jnp.tanh(c[l])
            inp = h[l]
        logits = h[1] @ p["wcT"] + p["bc"][0]
        preds.append(jnp.max(logits, axis=-1))
    pred = jnp.stack(preds, axis=1)                            # (B, T)
    return pred, (jnp.stack(h, axis=0), jnp.stack(c, axis=0))


# ----------------------------------------------------------------------------
if __name__ == "__main__":
    B, Cin, Himg, Wimg = 2, 3, 16, 16
    Cout = 8                    # stand-in backbone channels
    V, E, H = 64, 32, 32        # voc_size, embedding_size, rnn_size (small)
    S = 8                       # caption length; captions fed as (S, B)

    key = jax.random.PRNGKey(0)
    keys = jax.random.split(key, 16)

    def init(k, shape, scale=0.1):
        return scale * jax.random.normal(k, shape, dtype=jnp.float32)

    # TODO(synk): the real torchvision backbone (settings.CNN_MODEL) is
    # unspecified; a small conv->relu->gap->fc stand-in is used for self.cnn.
    params = {
        "emb_w":  init(keys[0], (V, E)),              # nn.Embedding(voc, emb)
        "conv_w": init(keys[1], (3, 3, Cin, Cout)),   # HWIO conv weight
        "conv_b": init(keys[2], (1, Cout)),
        "fc_w":   init(keys[3], (Cout, E)),           # cnn.fc (already W^T)
        "fc_b":   init(keys[4], (1, E)),
        "wih0":   init(keys[5], (E, 4 * H)),          # LSTM l0 W_ih^T (i,f,g,o)
        "whh0":   init(keys[6], (H, 4 * H)),          # LSTM l0 W_hh^T
        "b0":     init(keys[7], (1, 4 * H)),          # b_ih0 + b_hh0 combined
        "wih1":   init(keys[8], (H, 4 * H)),
        "whh1":   init(keys[9], (H, 4 * H)),
        "b1":     init(keys[10], (1, 4 * H)),
        "wcT":    init(keys[11], (H, V)),             # classifier W^T
        "bc":     init(keys[12], (1, V)),
    }

    imgs_nchw = jax.random.normal(keys[13], (B, Cin, Himg, Wimg), dtype=jnp.float32)
    imgs_nhwc = jnp.transpose(imgs_nchw, (0, 2, 3, 1))   # NCHW -> NHWC boundary
    captions = jax.random.randint(keys[14], (S, B), 0, V)

    pred, (h_n, c_n) = caption_model_forward(imgs_nhwc, captions, params)
    jax.block_until_ready((pred, h_n, c_n))

    pred_ref, (h_ref, c_ref) = reference_forward(imgs_nhwc, captions, params)
    assert pred.shape == (B, S) and h_n.shape == (2, B, H) and c_n.shape == (2, B, H)
    # Kernel matmuls use bf16 operands (f32 accumulation) vs. the pure-f32
    # reference, so tolerances are bf16-level.
    assert jnp.allclose(pred, pred_ref, atol=2e-2, rtol=2e-2)
    assert jnp.allclose(h_n, h_ref, atol=2e-2, rtol=2e-2)
    assert jnp.allclose(c_n, c_ref, atol=2e-2, rtol=2e-2)

    print("KERNEL_OK")
</pallas_src>

<mosaic_0001>
module attributes {stable_mosaic.version = 11 : i64} {
  func.func @_cnn_kernel(%arg0: i32, %arg1: memref<1x256x27xbf16, #tpu.memory_space<vmem>>, %arg2: memref<27x8xbf16, #tpu.memory_space<vmem>>, %arg3: memref<1x8xf32, #tpu.memory_space<vmem>>, %arg4: memref<8x32xbf16, #tpu.memory_space<vmem>>, %arg5: memref<1x32xf32, #tpu.memory_space<vmem>>, %arg6: memref<1x1x32xf32, #tpu.memory_space<vmem>>) attributes {dimension_semantics = [#tpu.dimension_semantics<parallel>], iteration_bounds = array<i64: 2>, scalar_prefetch = 0 : i64, scratch_operands = 0 : i64, tpu.core_type = #tpu.core_type<tc>, window_params = [{transform_indices = @transform_0, window_bounds = array<i64: 1, 256, 27>}, {pipeline_mode = #tpu.pipeline_mode<synchronous>, transform_indices = @transform_1, window_bounds = array<i64: 27, 8>}, {pipeline_mode = #tpu.pipeline_mode<synchronous>, transform_indices = @transform_2, window_bounds = array<i64: 1, 8>}, {pipeline_mode = #tpu.pipeline_mode<synchronous>, transform_indices = @transform_3, window_bounds = array<i64: 8, 32>}, {pipeline_mode = #tpu.pipeline_mode<synchronous>, transform_indices = @transform_4, window_bounds = array<i64: 1, 32>}, {transform_indices = @transform_5, window_bounds = array<i64: 1, 1, 32>}]} {
    %c0 = arith.constant 0 : index
    %c0_0 = arith.constant 0 : index
    %c0_1 = arith.constant 0 : index
    %0 = vector.load %arg1[%c0, %c0_0, %c0_1] : memref<1x256x27xbf16, #tpu.memory_space<vmem>>, vector<1x256x27xbf16>
    %1 = vector.shape_cast %0 : vector<1x256x27xbf16> to vector<256x27xbf16>
    %c0_2 = arith.constant 0 : index
    %c0_3 = arith.constant 0 : index
    %2 = vector.load %arg2[%c0_2, %c0_3] : memref<27x8xbf16, #tpu.memory_space<vmem>>, vector<27x8xbf16>
    %cst = arith.constant dense<0.000000e+00> : vector<256x8xf32>
    %3 = tpu.matmul %1, %2, %cst {dimension_numbers = #tpu.dot_dimension_numbers<[1], [0], [0], [1], [0, 0, 1, 1], [], []>} : vector<256x27xbf16>, vector<27x8xbf16>, vector<256x8xf32> -> vector<256x8xf32>
    %c0_4 = arith.constant 0 : index
    %c0_5 = arith.constant 0 : index
    %4 = vector.load %arg3[%c0_4, %c0_5] : memref<1x8xf32, #tpu.memory_space<vmem>>, vector<1x8xf32>
    %5 = vector.broadcast %4 : vector<1x8xf32> to vector<256x8xf32>
    %6 = arith.addf %3, %5 : vector<256x8xf32>
    %cst_6 = arith.constant 0.000000e+00 : f32
    %7 = vector.broadcast %cst_6 : f32 to vector<256x8xf32>
    %8 = arith.maximumf %6, %7 : vector<256x8xf32>
    %cst_7 = arith.constant dense<0.000000e+00> : vector<8xf32>
    %9 = vector.multi_reduction <add>, %8, %cst_7 [0] : vector<256x8xf32> to vector<8xf32>
    %10 = vector.shape_cast %9 : vector<8xf32> to vector<1x8xf32>
    %cst_8 = arith.constant 3.906250e-03 : f32
    %11 = vector.broadcast %cst_8 : f32 to vector<1x8xf32>
    %12 = arith.mulf %10, %11 : vector<1x8xf32>
    %13 = arith.truncf %12 : vector<1x8xf32> to vector<1x8xbf16>
    %c0_9 = arith.constant 0 : index
    %c0_10 = arith.constant 0 : index
    %14 = vector.load %arg4[%c0_9, %c0_10] : memref<8x32xbf16, #tpu.memory_space<vmem>>, vector<8x32xbf16>
    %cst_11 = arith.constant dense<0.000000e+00> : vector<1x32xf32>
    %15 = tpu.matmul %13, %14, %cst_11 {dimension_numbers = #tpu.dot_dimension_numbers<[1], [0], [0], [1], [0, 0, 1, 1], [], []>} : vector<1x8xbf16>, vector<8x32xbf16>, vector<1x32xf32> -> vector<1x32xf32>
    %c0_12 = arith.constant 0 : index
    %c0_13 = arith.constant 0 : index
    %16 = vector.load %arg5[%c0_12, %c0_13] : memref<1x32xf32, #tpu.memory_space<vmem>>, vector<1x32xf32>
    %17 = arith.addf %15, %16 : vector<1x32xf32>
    %c0_14 = arith.constant 0 : index
    %c0_15 = arith.constant 0 : index
    %c0_16 = arith.constant 0 : index
    %18 = vector.load %arg6[%c0_14, %c0_15, %c0_16] : memref<1x1x32xf32, #tpu.memory_space<vmem>>, vector<1x1x32xf32>
    %19 = vector.shape_cast %18 : vector<1x1x32xf32> to vector<1x32xf32>
    %20 = vector.shape_cast %17 : vector<1x32xf32> to vector<1x1x32xf32>
    tpu.vector_store %arg6[%c0_14, %c0_15, %c0_16], %20 {strides = array<i32>} : memref<1x1x32xf32, #tpu.memory_space<vmem>>, vector<1x1x32xf32>,
    return
  }
  func.func @transform_0(%arg0: i32) -> (i32, i32, i32) {
    %c0_i32 = arith.constant 0 : i32
    %c0_i32_0 = arith.constant 0 : i32
    %c0_i32_1 = arith.constant 0 : i32
    return %arg0, %c0_i32, %c0_i32_0 : i32, i32, i32
  }
  func.func @transform_1(%arg0: i32) -> (i32, i32) {
    %c0_i32 = arith.constant 0 : i32
    %c0_i32_0 = arith.constant 0 : i32
    %c0_i32_1 = arith.constant 0 : i32
    return %c0_i32, %c0_i32_0 : i32, i32
  }
  func.func @transform_2(%arg0: i32) -> (i32, i32) {
    %c0_i32 = arith.constant 0 : i32
    %c0_i32_0 = arith.constant 0 : i32
    %c0_i32_1 = arith.constant 0 : i32
    return %c0_i32, %c0_i32_0 : i32, i32
  }
  func.func @transform_3(%arg0: i32) -> (i32, i32) {
    %c0_i32 = arith.constant 0 : i32
    %c0_i32_0 = arith.constant 0 : i32
    %c0_i32_1 = arith.constant 0 : i32
    return %c0_i32, %c0_i32_0 : i32, i32
  }
  func.func @transform_4(%arg0: i32) -> (i32, i32) {
    %c0_i32 = arith.constant 0 : i32
    %c0_i32_0 = arith.constant 0 : i32
    %c0_i32_1 = arith.constant 0 : i32
    return %c0_i32, %c0_i32_0 : i32, i32
  }
  func.func @transform_5(%arg0: i32) -> (i32, i32, i32) {
    %c0_i32 = arith.constant 0 : i32
    %c0_i32_0 = arith.constant 0 : i32
    %c0_i32_1 = arith.constant 0 : i32
    return %arg0, %c0_i32, %c0_i32_0 : i32, i32, i32
  }
}

</mosaic_0001>

<llo_original>
// kernel: tpu_custom_call.1
$region0: #{tpu_custom_call.1}
  #allocation0 [shape = 'u32[]', space=smem, size = 0x4, offset = 0x4, fixed_abs, tag = 'smem constant byte address 0x4 - core index']
  #allocation1 [shape = 'u32[144,128]{1,0:T(1,128)}', space=vmem, size = 0x12000, scoped, tag = 'internal scratch']
  %s0 = inlined_call_operand.vmem [shape: bf16[2,256,27], index: 0, kind: input, shape index: {}]
  %s1 = inlined_call_operand.vmem [shape: bf16[27,8], index: 1, kind: input, shape index: {}]
  %s2 = inlined_call_operand.vmem [shape: f32[1,8], index: 2, kind: input, shape index: {}]
  %s3 = inlined_call_operand.vmem [shape: bf16[8,32], index: 3, kind: input, shape index: {}]
  %s4 = inlined_call_operand.vmem [shape: f32[1,32], index: 4, kind: input, shape index: {}]
  %s5 = inlined_call_operand.hbm [shape: f32[2,1,32], index: 5, kind: output, shape index: {}]
  %s6 = sld [smem:[#allocation0]]
  $region53: #{tpu_custom_call.1} parent=0
    _
  %s8 = ssub.s32 1, %s6
  %s9 = scalar_select 0, %s8, %s6
  $region1: #{tpu_custom_call.1} parent=0
    #allocation2 [shape = 'u8[1024]{0}', space=vmem, size = 0x400, scoped, tag = 'output window, operand 0']
    #allocation3 [shape = 's32[2]{0}', space=sflag, size = 0x8, scoped, tag = 'scoped memory for tpu_custom_call.1']
    %10 = vsyncpa [#allocation3], 0
    %s11 = scalar_lea.sflag [#allocation3], 1
    %12 = vsyncpa %s11, 0
    loop: start=0, step=1, limit=4
    $region2: #{tpu_custom_call.1} parent=1 // loop_pre_header
      _
    $region3: #{tpu_custom_call.1} parent=1 // loop_header
      %s14 = sphi 0, %s18
      %p15 = scmp.ge.s32.totalorder %s14, 4
      %s24 = sphi 0, %s26
      %s27 = sphi 0, %s24
      %s28 = sphi 0, %s27
      %s44 = sphi 0, %s28
      %s48 = sphi 0, %s48
      %s50 = sphi 0, %s48
      %s51 = sphi 0, %s50
      %s65 = sphi 0, %s51
      %s69 = sphi 0, %s69
      %s71 = sphi 0, %s69
      %s72 = sphi 0, %s71
      %s86 = sphi 0, %s72
      %s90 = sphi 0, %s90
      %s92 = sphi 0, %s90
      %s93 = sphi 0, %s92
      %s107 = sphi 0, %s93
      %s111 = sphi 0, %s111
      %s113 = sphi 0, %s111
      %s114 = sphi 0, %s113
      %s128 = sphi 0, %s114
      %s134 = sphi 0, %s136
      %s137 = sphi 0, %s134
      %s138 = sphi 0, %s137
      %s154 = sphi 0, %s138
    $region4: #{tpu_custom_call.1} parent=1 // loop_header_branch
      %17 = sbr.rel (%p15) target = $region8
    $region5: #{tpu_custom_call.1} parent=1 // loop_body
      %s19 = ssub.s32 %s14, 1
      %s20 = ssub.s32 %s14, 2
      %s21 = sadd.s32 %s14, 1
      %s22 = ssub.s32 %s14, %s21
      %p23 = scmp.eq.s32.totalorder %s22, 0
      %s25 = sadd.s32 %s24, 1
      %s26 = scalar_select %p23, %s24, %s25
      %p29 = pneg %p23
      %p30 = scmp.eq.s32.totalorder %s14, 1
      %p31 = por %p29, %p30
      %p32 = scmp.ne.s32.totalorder %s24, %s27
      %p33 = scmp.eq.s32.totalorder %s14, 0
      %p34 = por %p32, %p33
      %p35 = scmp.ne.s32.totalorder %s24, %s27
      %p36 = scmp.eq.s32.totalorder %s19, 1
      %p37 = por %p35, %p36
      %p38 = scmp.ne.s32.totalorder %s27, %s28
      %p39 = scmp.eq.s32.totalorder %s19, 0
      %p40 = por %p38, %p39
      %p41 = scmp.ne.s32.totalorder %s27, %s28
      %p42 = scmp.eq.s32.totalorder %s20, 1
      %p43 = por %p41, %p42
      %p45 = scmp.ne.s32.totalorder %s28, %s44
      %p46 = scmp.eq.s32.totalorder %s20, 0
      %p47 = por %p45, %p46
      %s49 = sadd.s32 %s48, 1
      %p52 = scmp.eq.s32.totalorder %s14, 1
      %p53 = scmp.ne.s32.totalorder %s48, %s50
      %p54 = scmp.eq.s32.totalorder %s14, 0
      %p55 = por %p53, %p54
      %p56 = scmp.ne.s32.totalorder %s48, %s50
      %p57 = scmp.eq.s32.totalorder %s19, 1
      %p58 = por %p56, %p57
      %p59 = scmp.ne.s32.totalorder %s50, %s51
      %p60 = scmp.eq.s32.totalorder %s19, 0
      %p61 = por %p59, %p60
      %p62 = scmp.ne.s32.totalorder %s50, %s51
      %p63 = scmp.eq.s32.totalorder %s20, 1
      %p64 = por %p62, %p63
      %p66 = scmp.ne.s32.totalorder %s51, %s65
      %p67 = scmp.eq.s32.totalorder %s20, 0
      %p68 = por %p66, %p67
      %s70 = sadd.s32 %s69, 1
      %p73 = scmp.eq.s32.totalorder %s14, 1
      %p74 = scmp.ne.s32.totalorder %s69, %s71
      %p75 = scmp.eq.s32.totalorder %s14, 0
      %p76 = por %p74, %p75
      %p77 = scmp.ne.s32.totalorder %s69, %s71
      %p78 = scmp.eq.s32.totalorder %s19, 1
      %p79 = por %p77, %p78
      %p80 = scmp.ne.s32.totalorder %s71, %s72
      %p81 = scmp.eq.s32.totalorder %s19, 0
      %p82 = por %p80, %p81
      %p83 = scmp.ne.s32.totalorder %s71, %s72
      %p84 = scmp.eq.s32.totalorder %s20, 1
      %p85 = por %p83, %p84
      %p87 = scmp.ne.s32.totalorder %s72, %s86
      %p88 = scmp.eq.s32.totalorder %s20, 0
      %p89 = por %p87, %p88
      %s91 = sadd.s32 %s90, 1
      %p94 = scmp.eq.s32.totalorder %s14, 1
      %p95 = scmp.ne.s32.totalorder %s90, %s92
      %p96 = scmp.eq.s32.totalorder %s14, 0
      %p97 = por %p95, %p96
      %p98 = scmp.ne.s32.totalorder %s90, %s92
      %p99 = scmp.eq.s32.totalorder %s19, 1
      %p100 = por %p98, %p99
      %p101 = scmp.ne.s32.totalorder %s92, %s93
      %p102 = scmp.eq.s32.totalorder %s19, 0
      %p103 = por %p101, %p102
      %p104 = scmp.ne.s32.totalorder %s92, %s93
      %p105 = scmp.eq.s32.totalorder %s20, 1
      %p106 = por %p104, %p105
      %p108 = scmp.ne.s32.totalorder %s93, %s107
      %p109 = scmp.eq.s32.totalorder %s20, 0
      %p110 = por %p108, %p109
      %s112 = sadd.s32 %s111, 1
      %p115 = scmp.eq.s32.totalorder %s14, 1
      %p116 = scmp.ne.s32.totalorder %s111, %s113
      %p117 = scmp.eq.s32.totalorder %s14, 0
      %p118 = por %p116, %p117
      %p119 = scmp.ne.s32.totalorder %s111, %s113
      %p120 = scmp.eq.s32.totalorder %s19, 1
      %p121 = por %p119, %p120
      %p122 = scmp.ne.s32.totalorder %s113, %s114
      %p123 = scmp.eq.s32.totalorder %s19, 0
      %p124 = por %p122, %p123
      %p125 = scmp.ne.s32.totalorder %s113, %s114
      %p126 = scmp.eq.s32.totalorder %s20, 1
      %p127 = por %p125, %p126
      %p129 = scmp.ne.s32.totalorder %s114, %s128
      %p130 = scmp.eq.s32.totalorder %s20, 0
      %p131 = por %p129, %p130
      %s132 = ssub.s32 %s14, %s21
      %p133 = scmp.eq.s32.totalorder %s132, 0
      %s135 = sadd.s32 %s134, 1
      %s136 = scalar_select %p133, %s134, %s135
      %p139 = pneg %p133
      %p140 = scmp.eq.s32.totalorder %s14, 1
      %p141 = por %p139, %p140
      %p142 = scmp.ne.s32.totalorder %s134, %s137
      %p143 = scmp.eq.s32.totalorder %s14, 0
      %p144 = por %p142, %p143
      %p145 = scmp.ne.s32.totalorder %s134, %s137
      %p146 = scmp.eq.s32.totalorder %s19, 1
      %p147 = por %p145, %p146
      %p148 = scmp.ne.s32.totalorder %s137, %s138
      %p149 = scmp.eq.s32.totalorder %s19, 0
      %p150 = por %p148, %p149
      %p151 = scmp.ne.s32.totalorder %s137, %s138
      %p152 = scmp.eq.s32.totalorder %s20, 1
      %p153 = por %p151, %p152
      %p155 = scmp.ne.s32.totalorder %s138, %s154
      %p156 = scmp.eq.s32.totalorder %s20, 0
      %p157 = por %p155, %p156
      %p158 = scmp.le.s32.totalorder 1, %s14
      %p159 = scmp.lt.s32.totalorder %s14, 3
      %p160 = pnand %p158, %p159
      %p161 = pneg %p160
      // Predicated region
      $region9: #{tpu_custom_call.1} parent=5 // pred_check
        _
      $region10: #{tpu_custom_call.1} parent=5 // pred_check_branch
        %163 = sbr.rel (%p160) target = $region12
      $region11: #{tpu_custom_call.1} parent=5 // pred_region
        %s164 = ssub.s32 %s14, 1
        // Predicated region
        $region13: #{tpu_custom_call.1} parent=11 // pred_check
          %p165 = pneg %p61
        $region14: #{tpu_custom_call.1} parent=11 // pred_check_branch
          %167 = sbr.rel (%p165) target = $region16
        $region15: #{tpu_custom_call.1} parent=11 // pred_region
          _
        $region16: #{tpu_custom_call.1} parent=11 // pred_fallthru
          _
        // Predicated region
        $region17: #{tpu_custom_call.1} parent=11 // pred_check
          %p168 = pneg %p82
        $region18: #{tpu_custom_call.1} parent=11 // pred_check_branch
          %170 = sbr.rel (%p168) target = $region20
        $region19: #{tpu_custom_call.1} parent=11 // pred_region
          _
        $region20: #{tpu_custom_call.1} parent=11 // pred_fallthru
          _
        // Predicated region
        $region21: #{tpu_custom_call.1} parent=11 // pred_check
          %p171 = pneg %p103
        $region22: #{tpu_custom_call.1} parent=11 // pred_check_branch
          %173 = sbr.rel (%p171) target = $region24
        $region23: #{tpu_custom_call.1} parent=11 // pred_region
          _
        $region24: #{tpu_custom_call.1} parent=11 // pred_fallthru
          _
        // Predicated region
        $region25: #{tpu_custom_call.1} parent=11 // pred_check
          %p174 = pneg %p124
        $region26: #{tpu_custom_call.1} parent=11 // pred_check_branch
          %176 = sbr.rel (%p174) target = $region28
        $region27: #{tpu_custom_call.1} parent=11 // pred_region
          _
        $region28: #{tpu_custom_call.1} parent=11 // pred_fallthru
          _
      $region12: #{tpu_custom_call.1} parent=5 // pred_fallthru
        _
      %p177 = scmp.lt.s32.totalorder %s14, 2
      // Predicated region
      $region29: #{tpu_custom_call.1} parent=5 // pred_check
        %p178 = pneg %p177
      $region30: #{tpu_custom_call.1} parent=5 // pred_check_branch
        %180 = sbr.rel (%p178) target = $region32
      $region31: #{tpu_custom_call.1} parent=5 // pred_region
        // Predicated region
        $region33: #{tpu_custom_call.1} parent=31 // pred_check
          %p181 = pneg %p34
        $region34: #{tpu_custom_call.1} parent=31 // pred_check_branch
          %183 = sbr.rel (%p181) target = $region36
        $region35: #{tpu_custom_call.1} parent=31 // pred_region
          %p184 = scmp.lt.s32.totalorder %s14, 1
          %s185 = scalar_select %p184, %s14, 1
          %s186 = smul.addr %s185, 32
          %s187 = smul.addr %s186, 4
          %s188 = scalar_lea.vmem %s0, %s187
        $region36: #{tpu_custom_call.1} parent=31 // pred_fallthru
          _
      $region32: #{tpu_custom_call.1} parent=5 // pred_fallthru
        _
      %p189 = scmp.le.s32.totalorder 1, %s14
      %p190 = scmp.lt.s32.totalorder %s14, 3
      %p191 = pnand %p189, %p190
      %p192 = pneg %p191
      // Predicated region
      $region37: #{tpu_custom_call.1} parent=5 // pred_check
        _
      $region38: #{tpu_custom_call.1} parent=5 // pred_check_branch
        %194 = sbr.rel (%p191) target = $region40
      $region39: #{tpu_custom_call.1} parent=5 // pred_region
        %s195 = ssub.s32 %s14, 1
        %p196 = scmp.lt.s32.totalorder %s19, 1
        %s197 = scalar_select %p196, %s19, 1
        %s198 = smul.addr %s197, 32
        %s199 = smul.addr %s198, 4
        %s200 = scalar_lea.vmem %s0, %s199
        %p201 = pneg %p40
        %p202 = pneg %p37
        %p203 = pneg %p61
        %p204 = pneg %p58
        %p205 = pneg %p82
        %p206 = pneg %p79
        %p207 = pneg %p103
        %p208 = pneg %p100
        %p209 = pneg %p124
        %p210 = pneg %p121
        %p211 = pneg %p150
        %p212 = pneg %p147
        %s213 = sand.u32 %s137, 1
        %s214 = scalar_lea.sflag [#allocation3], %s213
        %s215 = sand.u32 %s137, 1
        %s216 = scalar_lea.vmem [#allocation2], %s215
        %p217 = scmp.lt.s32.totalorder %s19, 1
        %s218 = scalar_select %p217, %s19, 1
        %s219 = smul.addr %s218, 32
        %s220 = smul.addr %s219, 4
        %s221 = scalar_lea.vmem %s0, %s220
        %v223 = vld [vmem:[%s221] sm:$0xf]
        %v224 = vld [vmem:[%s221 + $0x4] sm:$0xf]
        %v225 = vld [vmem:[%s221 + $0x8] sm:$0xf]
        %v226 = vld [vmem:[%s221 + $0xc] sm:$0xf]
        %v227 = vld [vmem:[%s221 + $0x10] sm:$0xf]
        %v228 = vld [vmem:[%s221 + $0x14] sm:$0xf]
        %v229 = vld [vmem:[%s221 + $0x18] sm:$0xf]
        %v230 = vld [vmem:[%s221 + $0x1c] sm:$0xf]
        %v231 = vld [vmem:[%s221 + $0x20] sm:$0xf]
        %v232 = vld [vmem:[%s221 + $0x24] sm:$0xf]
        %v233 = vld [vmem:[%s221 + $0x28] sm:$0xf]
        %v234 = vld [vmem:[%s221 + $0x2c] sm:$0xf]
        %v235 = vld [vmem:[%s221 + $0x30] sm:$0xf]
        %v236 = vld [vmem:[%s221 + $0x34] sm:$0xf]
        %v237 = vld [vmem:[%s221 + $0x38] sm:$0xf]
        %v238 = vld [vmem:[%s221 + $0x3c] sm:$0xf]
        %v239 = vld [vmem:[%s221 + $0x40] sm:$0xf]
        %v240 = vld [vmem:[%s221 + $0x44] sm:$0xf]
        %v241 = vld [vmem:[%s221 + $0x48] sm:$0xf]
        %v242 = vld [vmem:[%s221 + $0x4c] sm:$0xf]
        %v243 = vld [vmem:[%s221 + $0x50] sm:$0xf]
        %v244 = vld [vmem:[%s221 + $0x54] sm:$0xf]
        %v245 = vld [vmem:[%s221 + $0x58] sm:$0xf]
        %v246 = vld [vmem:[%s221 + $0x5c] sm:$0xf]
        %v247 = vld [vmem:[%s221 + $0x60] sm:$0xf]
        %v248 = vld [vmem:[%s221 + $0x64] sm:$0xf]
        %v249 = vld [vmem:[%s221 + $0x68] sm:$0xf]
        %v250 = vld [vmem:[%s221 + $0x6c] sm:$0xf]
        %v251 = vld [vmem:[%s221 + $0x70] sm:$0xf]
        %v252 = vld [vmem:[%s221 + $0x74] sm:$0xf]
        %v253 = vld [vmem:[%s221 + $0x78] sm:$0xf]
        %v254 = vld [vmem:[%s221 + $0x7c] sm:$0xf]
        %v255 = vld [vmem:[%s1] sm:$0xf]
        %v256 = vld [vmem:[%s1 + $0x4] sm:$0xf]
        %v257 = vld [vmem:[%s1 + $0x8] sm:$0xf]
        %v258 = vld [vmem:[%s1 + $0xc] sm:$0x3]
        %v259 = vld [vmem:[%s2] sm:$0x1]
        %v261 = vlaneseq
        %v262 = vshrl.u32 %v261, 7
        %v263 = vsub.s32 0, %v262
        %v264 = vrot.slane %v259, %v263
        %v298 = vunpack.c.l.b16 %v223
        %v299 = vunpack.c.l.b16 %v224
        %v300 = vunpack.c.l.b16 %v225
        %v301 = vunpack.c.l.b16 %v226
        %v302 = vunpack.c.l.b16 %v227
        %v303 = vunpack.c.l.b16 %v228
        %v304 = vunpack.c.l.b16 %v229
        %v305 = vunpack.c.l.b16 %v230
        %v306 = vunpack.c.l.b16 %v231
        %v307 = vunpack.c.l.b16 %v232
        %v308 = vunpack.c.l.b16 %v233
        %v309 = vunpack.c.l.b16 %v234
        %v310 = vunpack.c.l.b16 %v235
        %v311 = vunpack.c.l.b16 %v236
        %v312 = vunpack.c.l.b16 %v237
        %v313 = vunpack.c.l.b16 %v238
        %v314 = vunpack.c.l.b16 %v239
        %v315 = vunpack.c.l.b16 %v240
        %v316 = vunpack.c.l.b16 %v241
        %v317 = vunpack.c.l.b16 %v242
        %v318 = vunpack.c.l.b16 %v243
        %v319 = vunpack.c.l.b16 %v244
        %v320 = vunpack.c.l.b16 %v245
        %v321 = vunpack.c.l.b16 %v246
        %v322 = vunpack.c.l.b16 %v247
        %v323 = vunpack.c.l.b16 %v248
        %v324 = vunpack.c.l.b16 %v249
        %v325 = vunpack.c.l.b16 %v250
        %v326 = vunpack.c.l.b16 %v251
        %v327 = vunpack.c.l.b16 %v252
        %v328 = vunpack.c.l.b16 %v253
        %v329 = vunpack.c.l.b16 %v254
        %v330 = vpack.c.b16 %v299, %v298
        %v331 = vpack.c.b16 %v301, %v300
        %v332 = vpack.c.b16 %v303, %v302
        %v333 = vpack.c.b16 %v305, %v304
        %v334 = vpack.c.b16 %v307, %v306
        %v335 = vpack.c.b16 %v309, %v308
        %v336 = vpack.c.b16 %v311, %v310
        %v337 = vpack.c.b16 %v313, %v312
        %v338 = vpack.c.b16 %v315, %v314
        %v339 = vpack.c.b16 %v317, %v316
        %v340 = vpack.c.b16 %v319, %v318
        %v341 = vpack.c.b16 %v321, %v320
        %v342 = vpack.c.b16 %v323, %v322
        %v343 = vpack.c.b16 %v325, %v324
        %v344 = vpack.c.b16 %v327, %v326
        %v345 = vpack.c.b16 %v329, %v328
        %v350 = vunpack.c.l.b16 %v255
        %v351 = vunpack.c.l.b16 %v256
        %v352 = vunpack.c.l.b16 %v257
        %v353 = vunpack.c.l.b16 %v258
        %v354 = vpack.c.b16 %v351, %v350
        %v355 = vpack.c.b16 %v353, %v352
        %vm357 = vcmask 220160
        %v359 = vsel %vm357, %v330, 0
        %v362 = vsel %vm357, %v331, 0
        %v365 = vsel %vm357, %v332, 0
        %v368 = vsel %vm357, %v333, 0
        %v371 = vsel %vm357, %v334, 0
        %v374 = vsel %vm357, %v335, 0
        %v377 = vsel %vm357, %v336, 0
        %v380 = vsel %vm357, %v337, 0
        %v383 = vsel %vm357, %v338, 0
        %v386 = vsel %vm357, %v339, 0
        %v389 = vsel %vm357, %v340, 0
        %v392 = vsel %vm357, %v341, 0
        %v395 = vsel %vm357, %v342, 0
        %v398 = vsel %vm357, %v343, 0
        %v401 = vsel %vm357, %v344, 0
        %v404 = vsel %vm357, %v345, 0
        %vm406 = vcmask 1044480
        %vm407 = vcmask 1045504
        %v408 = vsel %vm406, 4294967295, 65535
        %v409 = vsel %vm407, %v408, 0
        %v411 = vand.u32 %v355, %v409
        %413 = vmatprep.subr.bf16.mxu0 0
        %414 = vmatpush1.bf16.msra.mxu0 %v354
        %415 = vmatprep.subr.bf16.mxu0 0
        %416 = vmatpush1.bf16.msra.mxu0 %v411
        %417 = vmatprep.subr.bf16.mxu0 0
        %418 = vmatpush1.bf16.msra.mxu0 0
        %419 = vmatprep.subr.bf16.mxu0 0
        %420 = vmatpush1.bf16.msra.mxu0 0
        %421 = vmatprep.subr.bf16.mxu0 0
        %422 = vmatpush1.bf16.msra.mxu0 0
        %423 = vmatprep.subr.bf16.mxu0 0
        %424 = vmatpush1.bf16.msra.mxu0 0
        %425 = vmatprep.subr.bf16.mxu0 0
        %426 = vmatpush1.bf16.msra.mxu0 0
        %427 = vmatprep.subr.bf16.mxu0 0
        %428 = vmatpush1.bf16.msra.mxu0 0
        %429 = vmatprep.subr.bf16.mxu0 0
        %430 = vmatpush1.bf16.msra.mxu0 0
        %431 = vmatprep.subr.bf16.mxu0 0
        %432 = vmatpush1.bf16.msra.mxu0 0
        %433 = vmatprep.subr.bf16.mxu0 0
        %434 = vmatpush1.bf16.msra.mxu0 0
        %435 = vmatprep.subr.bf16.mxu0 0
        %436 = vmatpush1.bf16.msra.mxu0 0
        %437 = vmatprep.subr.bf16.mxu0 0
        %438 = vmatpush1.bf16.msra.mxu0 0
        %439 = vmatprep.subr.bf16.mxu0 0
        %440 = vmatpush1.bf16.msra.mxu0 0
        %441 = vmatprep.subr.bf16.mxu0 0
        %442 = vmatpush1.bf16.msra.mxu0 0
        %443 = vmatprep.subr.bf16.mxu0 0
        %444 = vmatpush1.bf16.msra.mxu0 0
        %445 = vmatprep.mubr.bf16.mxu0 0
        %446 = vmatmul.mubr.bf16.gmra.mrb[0].mxu0 %v359
        %v447 = vpop.f32.mrb[0].mxu0
        %v448 = vadd.f32 %v264, %v447
        %v449 = vpop.f32.mrb[0].mxu0
        %v450 = vpop.f32.mrb[0].mxu0
        %v451 = vadd.f32 %v264, %v450
        %v452 = vpop.f32.mrb[0].mxu0
        %453 = vmatprep.mubr.bf16.mxu0 0
        %454 = vmatmul.mubr.bf16.gmra.mrb[0].mxu0 %v362
        %v455 = vpop.f32.mrb[0].mxu0
        %v456 = vadd.f32 %v264, %v455
        %v457 = vpop.f32.mrb[0].mxu0
        %v458 = vpop.f32.mrb[0].mxu0
        %v459 = vadd.f32 %v264, %v458
        %v460 = vpop.f32.mrb[0].mxu0
        %461 = vmatprep.mubr.bf16.mxu0 0
        %462 = vmatmul.mubr.bf16.gmra.mrb[0].mxu0 %v365
        %v463 = vpop.f32.mrb[0].mxu0
        %v464 = vadd.f32 %v264, %v463
        %v465 = vpop.f32.mrb[0].mxu0
        %v466 = vpop.f32.mrb[0].mxu0
        %v467 = vadd.f32 %v264, %v466
        %v468 = vpop.f32.mrb[0].mxu0
        %469 = vmatprep.mubr.bf16.mxu0 0
        %470 = vmatmul.mubr.bf16.gmra.mrb[0].mxu0 %v368
        %v471 = vpop.f32.mrb[0].mxu0
        %v472 = vadd.f32 %v264, %v471
        %v473 = vpop.f32.mrb[0].mxu0
        %v474 = vpop.f32.mrb[0].mxu0
        %v475 = vadd.f32 %v264, %v474
        %v476 = vpop.f32.mrb[0].mxu0
        %477 = vmatprep.mubr.bf16.mxu0 0
        %478 = vmatmul.mubr.bf16.gmra.mrb[0].mxu0 %v371
        %v479 = vpop.f32.mrb[0].mxu0
        %v480 = vadd.f32 %v264, %v479
        %v481 = vpop.f32.mrb[0].mxu0
        %v482 = vpop.f32.mrb[0].mxu0
        %v483 = vadd.f32 %v264, %v482
        %v484 = vpop.f32.mrb[0].mxu0
        %485 = vmatprep.mubr.bf16.mxu0 0
        %486 = vmatmul.mubr.bf16.gmra.mrb[0].mxu0 %v374
        %v487 = vpop.f32.mrb[0].mxu0
        %v488 = vadd.f32 %v264, %v487
        %v489 = vpop.f32.mrb[0].mxu0
        %v490 = vpop.f32.mrb[0].mxu0
        %v491 = vadd.f32 %v264, %v490
        %v492 = vpop.f32.mrb[0].mxu0
        %493 = vmatprep.mubr.bf16.mxu0 0
        %494 = vmatmul.mubr.bf16.gmra.mrb[0].mxu0 %v377
        %v495 = vpop.f32.mrb[0].mxu0
        %v496 = vadd.f32 %v264, %v495
        %v497 = vpop.f32.mrb[0].mxu0
        %v498 = vpop.f32.mrb[0].mxu0
        %v499 = vadd.f32 %v264, %v498
        %v500 = vpop.f32.mrb[0].mxu0
        %501 = vmatprep.mubr.bf16.mxu0 0
        %502 = vmatmul.mubr.bf16.gmra.mrb[0].mxu0 %v380
        %v503 = vpop.f32.mrb[0].mxu0
        %v504 = vadd.f32 %v264, %v503
        %v505 = vpop.f32.mrb[0].mxu0
        %v506 = vpop.f32.mrb[0].mxu0
        %v507 = vadd.f32 %v264, %v506
        %v508 = vpop.f32.mrb[0].mxu0
        %509 = vmatprep.mubr.bf16.mxu0 0
        %510 = vmatmul.mubr.bf16.gmra.mrb[0].mxu0 %v383
        %v511 = vpop.f32.mrb[0].mxu0
        %v512 = vadd.f32 %v264, %v511
        %v513 = vpop.f32.mrb[0].mxu0
        %v514 = vpop.f32.mrb[0].mxu0
        %v515 = vadd.f32 %v264, %v514
        %v516 = vpop.f32.mrb[0].mxu0
        %517 = vmatprep.mubr.bf16.mxu0 0
        %518 = vmatmul.mubr.bf16.gmra.mrb[0].mxu0 %v386
        %v519 = vpop.f32.mrb[0].mxu0
        %v520 = vadd.f32 %v264, %v519
        %v521 = vpop.f32.mrb[0].mxu0
        %v522 = vpop.f32.mrb[0].mxu0
        %v523 = vadd.f32 %v264, %v522
        %v524 = vpop.f32.mrb[0].mxu0
        %525 = vmatprep.mubr.bf16.mxu0 0
        %526 = vmatmul.mubr.bf16.gmra.mrb[0].mxu0 %v389
        %v527 = vpop.f32.mrb[0].mxu0
        %v528 = vadd.f32 %v264, %v527
        %v529 = vpop.f32.mrb[0].mxu0
        %v530 = vpop.f32.mrb[0].mxu0
        %v531 = vadd.f32 %v264, %v530
        %v532 = vpop.f32.mrb[0].mxu0
        %533 = vmatprep.mubr.bf16.mxu0 0
        %534 = vmatmul.mubr.bf16.gmra.mrb[0].mxu0 %v392
        %v535 = vpop.f32.mrb[0].mxu0
        %v536 = vadd.f32 %v264, %v535
        %v537 = vpop.f32.mrb[0].mxu0
        %v538 = vpop.f32.mrb[0].mxu0
        %v539 = vadd.f32 %v264, %v538
        %v540 = vpop.f32.mrb[0].mxu0
        %541 = vmatprep.mubr.bf16.mxu0 0
        %542 = vmatmul.mubr.bf16.gmra.mrb[0].mxu0 %v395
        %v543 = vpop.f32.mrb[0].mxu0
        %v544 = vadd.f32 %v264, %v543
        %v545 = vpop.f32.mrb[0].mxu0
        %v546 = vpop.f32.mrb[0].mxu0
        %v547 = vadd.f32 %v264, %v546
        %v548 = vpop.f32.mrb[0].mxu0
        %549 = vmatprep.mubr.bf16.mxu0 0
        %550 = vmatmul.mubr.bf16.gmra.mrb[0].mxu0 %v398
        %v551 = vpop.f32.mrb[0].mxu0
        %v552 = vadd.f32 %v264, %v551
        %v553 = vpop.f32.mrb[0].mxu0
        %v554 = vpop.f32.mrb[0].mxu0
        %v555 = vadd.f32 %v264, %v554
        %v556 = vpop.f32.mrb[0].mxu0
        %557 = vmatprep.mubr.bf16.mxu0 0
        %558 = vmatmul.mubr.bf16.gmra.mrb[0].mxu0 %v401
        %v559 = vpop.f32.mrb[0].mxu0
        %v560 = vadd.f32 %v264, %v559
        %v561 = vpop.f32.mrb[0].mxu0
        %v562 = vpop.f32.mrb[0].mxu0
        %v563 = vadd.f32 %v264, %v562
        %v564 = vpop.f32.mrb[0].mxu0
        %565 = vmatprep.mubr.bf16.mxu0 0
        %566 = vmatmul.mubr.bf16.gmra.mrb[0].mxu0 %v404
        %v567 = vpop.f32.mrb[0].mxu0
        %v568 = vadd.f32 %v264, %v567
        %v569 = vpop.f32.mrb[0].mxu0
        %v570 = vpop.f32.mrb[0].mxu0
        %v571 = vadd.f32 %v264, %v570
        %v572 = vpop.f32.mrb[0].mxu0
        %573 = vdwg.mxu0
        %v574 = vmax.f32 %v448, 0.0
        %v575 = vmax.f32 %v451, 0.0
        %v576 = vmax.f32 %v456, 0.0
        %v577 = vmax.f32 %v459, 0.0
        %v578 = vmax.f32 %v464, 0.0
        %v579 = vmax.f32 %v467, 0.0
        %v580 = vmax.f32 %v472, 0.0
        %v581 = vmax.f32 %v475, 0.0
        %v582 = vmax.f32 %v480, 0.0
        %v583 = vmax.f32 %v483, 0.0
        %v584 = vmax.f32 %v488, 0.0
        %v585 = vmax.f32 %v491, 0.0
        %v586 = vmax.f32 %v496, 0.0
        %v587 = vmax.f32 %v499, 0.0
        %v588 = vmax.f32 %v504, 0.0
        %v589 = vmax.f32 %v507, 0.0
        %v590 = vmax.f32 %v512, 0.0
        %v591 = vmax.f32 %v515, 0.0
        %v592 = vmax.f32 %v520, 0.0
        %v593 = vmax.f32 %v523, 0.0
        %v594 = vmax.f32 %v528, 0.0
        %v595 = vmax.f32 %v531, 0.0
        %v596 = vmax.f32 %v536, 0.0
        %v597 = vmax.f32 %v539, 0.0
        %v598 = vmax.f32 %v544, 0.0
        %v599 = vmax.f32 %v547, 0.0
        %v600 = vmax.f32 %v552, 0.0
        %v601 = vmax.f32 %v555, 0.0
        %v602 = vmax.f32 %v560, 0.0
        %v603 = vmax.f32 %v563, 0.0
        %v604 = vmax.f32 %v568, 0.0
        %v605 = vmax.f32 %v571, 0.0
        %vm606 = vcmask 64512
        %v607 = vsel %vm606, %v574, 0.0
        %v608 = vsel %vm606, %v575, 0.0
        %v609 = vadd.f32 %v607, %v608
        %v610 = vsel %vm606, %v576, 0.0
        %v611 = vadd.f32 %v609, %v610
        %v612 = vsel %vm606, %v577, 0.0
        %v613 = vadd.f32 %v611, %v612
        %v614 = vsel %vm606, %v578, 0.0
        %v615 = vadd.f32 %v613, %v614
        %v616 = vsel %vm606, %v579, 0.0
        %v617 = vadd.f32 %v615, %v616
        %v618 = vsel %vm606, %v580, 0.0
        %v619 = vadd.f32 %v617, %v618
        %v620 = vsel %vm606, %v581, 0.0
        %v621 = vadd.f32 %v619, %v620
        %v622 = vsel %vm606, %v582, 0.0
        %v623 = vadd.f32 %v621, %v622
        %v624 = vsel %vm606, %v583, 0.0
        %v625 = vadd.f32 %v623, %v624
        %v626 = vsel %vm606, %v584, 0.0
        %v627 = vadd.f32 %v625, %v626
        %v628 = vsel %vm606, %v585, 0.0
        %v629 = vadd.f32 %v627, %v628
        %v630 = vsel %vm606, %v586, 0.0
        %v631 = vadd.f32 %v629, %v630
        %v632 = vsel %vm606, %v587, 0.0
        %v633 = vadd.f32 %v631, %v632
        %v634 = vsel %vm606, %v588, 0.0
        %v635 = vadd.f32 %v633, %v634
        %v636 = vsel %vm606, %v589, 0.0
        %v637 = vadd.f32 %v635, %v636
        %v638 = vsel %vm606, %v590, 0.0
        %v639 = vadd.f32 %v637, %v638
        %v640 = vsel %vm606, %v591, 0.0
        %v641 = vadd.f32 %v639, %v640
        %v642 = vsel %vm606, %v592, 0.0
        %v643 = vadd.f32 %v641, %v642
        %v644 = vsel %vm606, %v593, 0.0
        %v645 = vadd.f32 %v643, %v644
        %v646 = vsel %vm606, %v594, 0.0
        %v647 = vadd.f32 %v645, %v646
        %v648 = vsel %vm606, %v595, 0.0
        %v649 = vadd.f32 %v647, %v648
        %v650 = vsel %vm606, %v596, 0.0
        %v651 = vadd.f32 %v649, %v650
        %v652 = vsel %vm606, %v597, 0.0
        %v653 = vadd.f32 %v651, %v652
        %v654 = vsel %vm606, %v598, 0.0
        %v655 = vadd.f32 %v653, %v654
        %v656 = vsel %vm606, %v599, 0.0
        %v657 = vadd.f32 %v655, %v656
        %v658 = vsel %vm606, %v600, 0.0
        %v659 = vadd.f32 %v657, %v658
        %v660 = vsel %vm606, %v601, 0.0
        %v661 = vadd.f32 %v659, %v660
        %v662 = vsel %vm606, %v602, 0.0
        %v663 = vadd.f32 %v661, %v662
        %v664 = vsel %vm606, %v603, 0.0
        %v665 = vadd.f32 %v663, %v664
        %v666 = vsel %vm606, %v604, 0.0
        %v667 = vadd.f32 %v665, %v666
        %v668 = vsel %vm606, %v605, 0.0
        %v669 = vadd.f32 %v667, %v668
        %v670 = vrot.slane %v669, 4
        %v671 = vadd.f32 %v669, %v670
        %v672 = vrot.slane %v671, 2
        %v673 = vadd.f32 %v671, %v672
        %v674 = vrot.slane %v673, 1
        %v675 = vadd.f32 %v673, %v674
        %v676 = vmul.f32 %v675, 0.00390625
        %v677 = vpack.c.bf16 %v676, %v676
        %v678 = vld [vmem:[%s3] sm:$0xf]
        %v679 = vld [vmem:[%s4] sm:$0x1]
        %v681 = vsel %vm606, %v677, 0
        %vm683 = vcmask 1043456
        %v685 = vsel %vm683, %v678, 0
        %687 = vmatprep.subr.bf16.mxu0 0
        %688 = vmatpush1.bf16.msra.mxu0 %v685
        %689 = vmatprep.subr.bf16.mxu0 0
        %690 = vmatpush1.bf16.msra.mxu0 0
        %691 = vmatprep.subr.bf16.mxu0 0
        %692 = vmatpush1.bf16.msra.mxu0 0
        %693 = vmatprep.subr.bf16.mxu0 0
        %694 = vmatpush1.bf16.msra.mxu0 0
        %695 = vmatprep.subr.bf16.mxu0 0
        %696 = vmatpush1.bf16.msra.mxu0 0
        %697 = vmatprep.subr.bf16.mxu0 0
        %698 = vmatpush1.bf16.msra.mxu0 0
        %699 = vmatprep.subr.bf16.mxu0 0
        %700 = vmatpush1.bf16.msra.mxu0 0
        %701 = vmatprep.subr.bf16.mxu0 0
        %702 = vmatpush1.bf16.msra.mxu0 0
        %703 = vmatprep.subr.bf16.mxu0 0
        %704 = vmatpush1.bf16.msra.mxu0 0
        %705 = vmatprep.subr.bf16.mxu0 0
        %706 = vmatpush1.bf16.msra.mxu0 0
        %707 = vmatprep.subr.bf16.mxu0 0
        %708 = vmatpush1.bf16.msra.mxu0 0
        %709 = vmatprep.subr.bf16.mxu0 0
        %710 = vmatpush1.bf16.msra.mxu0 0
        %711 = vmatprep.subr.bf16.mxu0 0
        %712 = vmatpush1.bf16.msra.mxu0 0
        %713 = vmatprep.subr.bf16.mxu0 0
        %714 = vmatpush1.bf16.msra.mxu0 0
        %715 = vmatprep.subr.bf16.mxu0 0
        %716 = vmatpush1.bf16.msra.mxu0 0
        %717 = vmatprep.subr.bf16.mxu0 0
        %718 = vmatpush1.bf16.msra.mxu0 0
        %719 = vmatprep.mubr.bf16.mxu0 0
        %720 = vmatmul.mubr.bf16.gmra.mrb[0].mxu0 %v681
        %v721 = vpop.f32.mrb[0].mxu0
        %v722 = vadd.f32 %v679, %v721
        %v723 = vpop.f32.mrb[0].mxu0
        %v724 = vpop.f32.mrb[0].mxu0
        %v725 = vpop.f32.mrb[0].mxu0
        %726 = vdwg.mxu0
        %vm727 = vcmask 253952
        %728 = vst.msk [vmem:[%s216] sm:$0x1] %vm727, %v722
        %s729 = sand.u32 %s137, 1
        %s730 = scalar_lea.sflag [#allocation3], %s729
        %s731 = sand.u32 %s137, 1
        %s732 = scalar_lea.vmem [#allocation2], %s731
        // Predicated region
        $region41: #{tpu_custom_call.1} parent=39 // pred_check
          %p733 = pneg %p147
        $region42: #{tpu_custom_call.1} parent=39 // pred_check_branch
          %735 = sbr.rel (%p733) target = $region44
        $region43: #{tpu_custom_call.1} parent=39 // pred_region
          %s737 = ssub.s32 16, 16
          %738 = vsyncadd %s730, %s737
          %s739 = smul.addr %s19, 16
          %s740 = scalar_lea.hbm %s5, %s739
          %s742 = sshll.u32 %s732, 4
          %s743 = int_to_ptr.vmem [resolvable:$true] %s742
          %745 = dma.vmem_to_hbm [thread:$0]  %s743, 16, %s740, %s730
        $region44: #{tpu_custom_call.1} parent=39 // pred_fallthru
          _
      $region40: #{tpu_custom_call.1} parent=5 // pred_fallthru
        _
      %p746 = scmp.le.s32.totalorder 2, %s14
      // Predicated region
      $region45: #{tpu_custom_call.1} parent=5 // pred_check
        %p747 = pneg %p746
      $region46: #{tpu_custom_call.1} parent=5 // pred_check_branch
        %749 = sbr.rel (%p747) target = $region48
      $region47: #{tpu_custom_call.1} parent=5 // pred_region
        %s750 = ssub.s32 %s14, 2
        // Predicated region
        $region49: #{tpu_custom_call.1} parent=47 // pred_check
          %p751 = pneg %p153
        $region50: #{tpu_custom_call.1} parent=47 // pred_check_branch
          %753 = sbr.rel (%p751) target = $region52
        $region51: #{tpu_custom_call.1} parent=47 // pred_region
          %s754 = sand.u32 %s138, 1
          %s755 = scalar_lea.sflag [#allocation3], %s754
          %s756 = sand.u32 %s138, 1
          %s757 = scalar_lea.vmem [#allocation2], %s756
          %758 = dma.done %s755, 16
        $region52: #{tpu_custom_call.1} parent=47 // pred_fallthru
          _
      $region48: #{tpu_custom_call.1} parent=5 // pred_fallthru
        _
    $region6: #{tpu_custom_call.1} parent=1 // loop_footer
      %s18 = sadd.s32 1, %s14
    $region7: #{tpu_custom_call.1} parent=1 // loop_footer_branch
      %13 = sbr.rel target = $region3
    $region8: #{tpu_custom_call.1} parent=1 // loop_exit
      _
    %759 = vsyncpa [#allocation3], 1
    %s760 = scalar_lea.sflag [#allocation3], 1
    %761 = vsyncpa %s760, 1

</llo_original>
